<compile_context>
chip_gen: v5e
topology: v5e:2x2
jax: 0.10.0
libtpu: 0.0.40
codegen_flags: <defaults>
</compile_context>

<pallas_src>
import functools
import numpy as np
import jax
import jax.numpy as jnp
from jax.experimental import pallas as pl
from jax.experimental.pallas import tpu as pltpu

LANE = 128
SUBLANE = 8
DEFAULT_TILE_CAP = 4096  # rows per grid step; big tiles amortize per-step overhead


def _round_up(v, m):
    return (v + m - 1) // m * m


# ----------------------------------------------------------------------------
# MADE mask construction (host-side numpy glue; mirrors MADE.update_masks with
# num_masks=1, natural_ordering=True, seed=0).  Masks are in (in, out) layout,
# matching the kernel's weight layout (x @ W).
# ----------------------------------------------------------------------------
def build_made_masks(nin, hidden_sizes, nout):
    assert nout % nin == 0, "nout must be an integer multiple of nin"
    L = len(hidden_sizes)
    rng = np.random.RandomState(0)
    m = {}
    m[-1] = np.arange(nin)  # natural ordering
    for l in range(L):
        m[l] = rng.randint(m[l - 1].min(), nin - 1, size=hidden_sizes[l])
    masks = [m[l - 1][:, None] <= m[l][None, :] for l in range(L)]
    masks.append(m[L - 1][:, None] < m[-1][None, :])
    if nout > nin:
        k = nout // nin
        masks[-1] = np.concatenate([masks[-1]] * k, axis=1)
    return [mk.astype(np.float32) for mk in masks]


# ----------------------------------------------------------------------------
# Pallas kernel: fused 4-layer masked MLP (matmul + bias + ReLU x3, matmul +
# bias).  Weights are lane-padded (multiples of 128) so hidden-layer VPU work
# and MXU feeds are lane-dense; the final store writes only the real nout
# columns (one masked store per grid step).
# ----------------------------------------------------------------------------
def armlp_kernel(x_ref, w1_ref, b1_ref, w2_ref, b2_ref, w3_ref, b3_ref,
                 w4_ref, b4_ref, o_ref):
    cdt = w1_ref.dtype  # compute dtype for MXU inputs (bf16 by default)
    x = x_ref[...].astype(cdt)  # in-kernel cast: avoids a separate XLA cast pass
    h = jnp.dot(x, w1_ref[...], preferred_element_type=jnp.float32)
    h = jnp.maximum(h + b1_ref[...], 0.0)
    h = jnp.dot(h.astype(cdt), w2_ref[...], preferred_element_type=jnp.float32)
    h = jnp.maximum(h + b2_ref[...], 0.0)
    h = jnp.dot(h.astype(cdt), w3_ref[...], preferred_element_type=jnp.float32)
    h = jnp.maximum(h + b3_ref[...], 0.0)
    o = jnp.dot(h.astype(cdt), w4_ref[...], preferred_element_type=jnp.float32)
    o = o + b4_ref[...]
    nout = o_ref.shape[1]
    o_ref[...] = o[:, :nout].astype(o_ref.dtype)  # narrow store, once per step


# ----------------------------------------------------------------------------
# One-time parameter prep (hoisted out of the per-call path): apply nothing
# extra (masks are already folded into W), pad out-feature dims to 128 lanes,
# cast weights to the compute dtype.  Padded rows/cols are zero, so results
# are unchanged (zeros stay zero through bias+ReLU of padded columns only
# feeding padded weight rows, which contribute zero).
# ----------------------------------------------------------------------------
def prepare_params(params, compute_dtype=jnp.bfloat16):
    pin = params[0][0].shape[0]  # width of activations feeding the next layer
    padded = []
    for w, b in params:
        d_in, d_out = w.shape
        pout = _round_up(d_out, LANE)
        wp = jnp.zeros((pin, pout), compute_dtype).at[:d_in, :d_out].set(
            w.astype(compute_dtype))
        bp = jnp.zeros((1, pout), jnp.float32).at[:, :d_out].set(
            b.astype(jnp.float32))
        padded.append((wp, bp))
        pin = pout
    nout = params[-1][0].shape[1]
    return tuple(padded), nout


# ----------------------------------------------------------------------------
# Jitted forward wrapper.
# ----------------------------------------------------------------------------
@functools.partial(jax.jit, static_argnames=("nout", "bm"))
def _armlp_apply(x, padded_params, *, nout, bm):
    B, nin = x.shape
    n_steps = pl.cdiv(B, bm)
    B_pad = n_steps * bm
    xc = x if B_pad == B else jnp.pad(x, ((0, B_pad - B), (0, 0)))

    (w1, b1), (w2, b2), (w3, b3), (w4, b4) = padded_params

    full = lambda a: pl.BlockSpec(a.shape, lambda i: (0, 0))  # resident operand
    grid_spec = pltpu.PrefetchScalarGridSpec(
        num_scalar_prefetch=0,
        grid=(n_steps,),
        in_specs=[
            pl.BlockSpec((bm, nin), lambda i: (i, 0)),  # x tile (full feature dim)
            full(w1), full(b1),
            full(w2), full(b2),
            full(w3), full(b3),
            full(w4), full(b4),
        ],
        out_specs=pl.BlockSpec((bm, nout), lambda i: (i, 0)),  # narrow out block
    )

    flops = 2 * B_pad * sum(w.shape[0] * w.shape[1] for w, _ in padded_params)
    bytes_accessed = (
        xc.size * xc.dtype.itemsize
        + sum(w.size * w.dtype.itemsize + b.size * b.dtype.itemsize
              for w, b in padded_params)
        + B_pad * nout * 4)

    out = pl.pallas_call(
        armlp_kernel,
        out_shape=jax.ShapeDtypeStruct((B_pad, nout), jnp.float32),
        grid_spec=grid_spec,
        compiler_params=pltpu.CompilerParams(
            # Grid steps only exist for B > tile cap; there they are
            # independent batch tiles, so let megacore shard them.
            dimension_semantics=("parallel",),
            vmem_limit_bytes=32 * 1024 * 1024),  # ample for bm<=4096; safe on v7x
        cost_estimate=pl.CostEstimate(flops=flops, transcendentals=0,
                                      bytes_accessed=bytes_accessed),
    )(xc, w1, b1, w2, b2, w3, b3, w4, b4)

    return out if B_pad == B else out[:B]


def armlp_forward(x, padded_params, nout, *, bm=None):
    """x: (B, nin) f32.  padded_params: output of prepare_params."""
    B = x.shape[0]
    if bm is None:
        # Single grid step whenever B fits one tile (no batch splitting on
        # single-TC v5e/v6e, and no tiny 2-way split on v7x for small B).
        bm = min(DEFAULT_TILE_CAP, B)
    bm = max(SUBLANE, _round_up(min(bm, B), SUBLANE))
    return _armlp_apply(x, padded_params, nout=nout, bm=bm)


# ----------------------------------------------------------------------------
# Parameter setup (deterministic synthetic init, masks folded in) + references.
# ----------------------------------------------------------------------------
def make_params(key, nin, nh, nout):
    hidden_sizes = [nh, nh, nh]
    dims = [nin] + hidden_sizes + [nout]
    masks = build_made_masks(nin, hidden_sizes, nout)
    params = []
    for (d_in, d_out), mk in zip(zip(dims, dims[1:]), masks):
        key, kw, kb = jax.random.split(key, 3)
        bound = 1.0 / np.sqrt(d_in)
        w = jax.random.uniform(kw, (d_in, d_out), jnp.float32, -bound, bound)
        b = jax.random.uniform(kb, (1, d_out), jnp.float32, -bound, bound)
        params.append((w * jnp.asarray(mk), b))  # autoregressive mask folded in
    return params


def reference_forward(x, params, compute_dtype=None):
    """Pure-JAX reference.  compute_dtype mimics the kernel's mixed precision."""
    h = x
    for i, (w, b) in enumerate(params):
        hin = h.astype(compute_dtype) if compute_dtype is not None else h
        wc = w.astype(compute_dtype) if compute_dtype is not None else w
        h = jnp.dot(hin, wc, preferred_element_type=jnp.float32) + b
        if i < len(params) - 1:
            h = jnp.maximum(h, 0.0)
    return h


if __name__ == "__main__":
    nin, nh, nout = 4, 32, 8   # nout must be an integer multiple of nin
    B = 256                    # fits one grid step -> no batch splitting

    key = jax.random.PRNGKey(0)
    kx, kp = jax.random.split(key)
    x = jax.random.normal(kx, (B, nin), jnp.float32)
    params = make_params(kp, nin, nh, nout)

    # One-time weight prep (padding + bf16 cast), then the jitted fused kernel.
    # For exact f32 parity use prepare_params(params, compute_dtype=jnp.float32).
    padded_params, nout_real = prepare_params(params, compute_dtype=jnp.bfloat16)
    out = jax.block_until_ready(armlp_forward(x, padded_params, nout_real))
    assert out.shape == (B, nout)

    # Tight check vs a reference using the same bf16-input/f32-accumulate math
    # (validates kernel mechanics)...
    ref_matched = reference_forward(x, params, compute_dtype=jnp.bfloat16)
    np.testing.assert_allclose(np.asarray(out), np.asarray(ref_matched),
                               rtol=1e-4, atol=1e-4)
    # ...and a loose check vs the pure-f32 module forward (validates semantics).
    ref_f32 = reference_forward(x, params)
    np.testing.assert_allclose(np.asarray(out), np.asarray(ref_f32),
                               rtol=5e-2, atol=5e-2)
    print("KERNEL_OK")
</pallas_src>

<mosaic_0001>
module attributes {stable_mosaic.version = 11 : i64} {
  func.func @armlp_kernel(%arg0: i32, %arg1: memref<256x4xf32, #tpu.memory_space<vmem>>, %arg2: memref<4x128xbf16, #tpu.memory_space<vmem>>, %arg3: memref<1x128xf32, #tpu.memory_space<vmem>>, %arg4: memref<128x128xbf16, #tpu.memory_space<vmem>>, %arg5: memref<1x128xf32, #tpu.memory_space<vmem>>, %arg6: memref<128x128xbf16, #tpu.memory_space<vmem>>, %arg7: memref<1x128xf32, #tpu.memory_space<vmem>>, %arg8: memref<128x128xbf16, #tpu.memory_space<vmem>>, %arg9: memref<1x128xf32, #tpu.memory_space<vmem>>, %arg10: memref<256x8xf32, #tpu.memory_space<vmem>>) attributes {dimension_semantics = [#tpu.dimension_semantics<parallel>], iteration_bounds = array<i64: 1>, scalar_prefetch = 0 : i64, scratch_operands = 0 : i64, tpu.core_type = #tpu.core_type<tc>, window_params = [{transform_indices = @transform_0, window_bounds = array<i64: 256, 4>}, {pipeline_mode = #tpu.pipeline_mode<synchronous>, transform_indices = @transform_1, window_bounds = array<i64: 4, 128>}, {pipeline_mode = #tpu.pipeline_mode<synchronous>, transform_indices = @transform_2, window_bounds = array<i64: 1, 128>}, {pipeline_mode = #tpu.pipeline_mode<synchronous>, transform_indices = @transform_3, window_bounds = array<i64: 128, 128>}, {pipeline_mode = #tpu.pipeline_mode<synchronous>, transform_indices = @transform_4, window_bounds = array<i64: 1, 128>}, {pipeline_mode = #tpu.pipeline_mode<synchronous>, transform_indices = @transform_5, window_bounds = array<i64: 128, 128>}, {pipeline_mode = #tpu.pipeline_mode<synchronous>, transform_indices = @transform_6, window_bounds = array<i64: 1, 128>}, {pipeline_mode = #tpu.pipeline_mode<synchronous>, transform_indices = @transform_7, window_bounds = array<i64: 128, 128>}, {pipeline_mode = #tpu.pipeline_mode<synchronous>, transform_indices = @transform_8, window_bounds = array<i64: 1, 128>}, {transform_indices = @transform_9, window_bounds = array<i64: 256, 8>}]} {
    %c0 = arith.constant 0 : index
    %c0_0 = arith.constant 0 : index
    %0 = vector.load %arg1[%c0, %c0_0] : memref<256x4xf32, #tpu.memory_space<vmem>>, vector<256x4xf32>
    %1 = arith.truncf %0 : vector<256x4xf32> to vector<256x4xbf16>
    %c0_1 = arith.constant 0 : index
    %c0_2 = arith.constant 0 : index
    %2 = vector.load %arg2[%c0_1, %c0_2] : memref<4x128xbf16, #tpu.memory_space<vmem>>, vector<4x128xbf16>
    %cst = arith.constant dense<0.000000e+00> : vector<256x128xf32>
    %3 = tpu.matmul %1, %2, %cst {dimension_numbers = #tpu.dot_dimension_numbers<[1], [0], [0], [1], [0, 0, 1, 1], [], []>} : vector<256x4xbf16>, vector<4x128xbf16>, vector<256x128xf32> -> vector<256x128xf32>
    %c0_3 = arith.constant 0 : index
    %c0_4 = arith.constant 0 : index
    %4 = vector.load %arg3[%c0_3, %c0_4] : memref<1x128xf32, #tpu.memory_space<vmem>>, vector<1x128xf32>
    %5 = vector.broadcast %4 : vector<1x128xf32> to vector<256x128xf32>
    %6 = arith.addf %3, %5 : vector<256x128xf32>
    %cst_5 = arith.constant 0.000000e+00 : f32
    %7 = vector.broadcast %cst_5 : f32 to vector<256x128xf32>
    %8 = arith.maximumf %6, %7 : vector<256x128xf32>
    %9 = arith.truncf %8 : vector<256x128xf32> to vector<256x128xbf16>
    %c0_6 = arith.constant 0 : index
    %c0_7 = arith.constant 0 : index
    %10 = vector.load %arg4[%c0_6, %c0_7] : memref<128x128xbf16, #tpu.memory_space<vmem>>, vector<128x128xbf16>
    %cst_8 = arith.constant dense<0.000000e+00> : vector<256x128xf32>
    %11 = tpu.matmul %9, %10, %cst_8 {dimension_numbers = #tpu.dot_dimension_numbers<[1], [0], [0], [1], [0, 0, 1, 1], [], []>} : vector<256x128xbf16>, vector<128x128xbf16>, vector<256x128xf32> -> vector<256x128xf32>
    %c0_9 = arith.constant 0 : index
    %c0_10 = arith.constant 0 : index
    %12 = vector.load %arg5[%c0_9, %c0_10] : memref<1x128xf32, #tpu.memory_space<vmem>>, vector<1x128xf32>
    %13 = vector.broadcast %12 : vector<1x128xf32> to vector<256x128xf32>
    %14 = arith.addf %11, %13 : vector<256x128xf32>
    %cst_11 = arith.constant 0.000000e+00 : f32
    %15 = vector.broadcast %cst_11 : f32 to vector<256x128xf32>
    %16 = arith.maximumf %14, %15 : vector<256x128xf32>
    %17 = arith.truncf %16 : vector<256x128xf32> to vector<256x128xbf16>
    %c0_12 = arith.constant 0 : index
    %c0_13 = arith.constant 0 : index
    %18 = vector.load %arg6[%c0_12, %c0_13] : memref<128x128xbf16, #tpu.memory_space<vmem>>, vector<128x128xbf16>
    %cst_14 = arith.constant dense<0.000000e+00> : vector<256x128xf32>
    %19 = tpu.matmul %17, %18, %cst_14 {dimension_numbers = #tpu.dot_dimension_numbers<[1], [0], [0], [1], [0, 0, 1, 1], [], []>} : vector<256x128xbf16>, vector<128x128xbf16>, vector<256x128xf32> -> vector<256x128xf32>
    %c0_15 = arith.constant 0 : index
    %c0_16 = arith.constant 0 : index
    %20 = vector.load %arg7[%c0_15, %c0_16] : memref<1x128xf32, #tpu.memory_space<vmem>>, vector<1x128xf32>
    %21 = vector.broadcast %20 : vector<1x128xf32> to vector<256x128xf32>
    %22 = arith.addf %19, %21 : vector<256x128xf32>
    %cst_17 = arith.constant 0.000000e+00 : f32
    %23 = vector.broadcast %cst_17 : f32 to vector<256x128xf32>
    %24 = arith.maximumf %22, %23 : vector<256x128xf32>
    %25 = arith.truncf %24 : vector<256x128xf32> to vector<256x128xbf16>
    %c0_18 = arith.constant 0 : index
    %c0_19 = arith.constant 0 : index
    %26 = vector.load %arg8[%c0_18, %c0_19] : memref<128x128xbf16, #tpu.memory_space<vmem>>, vector<128x128xbf16>
    %cst_20 = arith.constant dense<0.000000e+00> : vector<256x128xf32>
    %27 = tpu.matmul %25, %26, %cst_20 {dimension_numbers = #tpu.dot_dimension_numbers<[1], [0], [0], [1], [0, 0, 1, 1], [], []>} : vector<256x128xbf16>, vector<128x128xbf16>, vector<256x128xf32> -> vector<256x128xf32>
    %c0_21 = arith.constant 0 : index
    %c0_22 = arith.constant 0 : index
    %28 = vector.load %arg9[%c0_21, %c0_22] : memref<1x128xf32, #tpu.memory_space<vmem>>, vector<1x128xf32>
    %29 = vector.broadcast %28 : vector<1x128xf32> to vector<256x128xf32>
    %30 = arith.addf %27, %29 : vector<256x128xf32>
    %31 = vector.extract_strided_slice %30 {offsets = [0, 0], sizes = [256, 8], strides = [1, 1]} : vector<256x128xf32> to vector<256x8xf32>
    %c0_23 = arith.constant 0 : index
    %c0_24 = arith.constant 0 : index
    %32 = vector.load %arg10[%c0_23, %c0_24] : memref<256x8xf32, #tpu.memory_space<vmem>>, vector<256x8xf32>
    tpu.vector_store %arg10[%c0_23, %c0_24], %31 {strides = array<i32>} : memref<256x8xf32, #tpu.memory_space<vmem>>, vector<256x8xf32>,
    return
  }
  func.func @transform_0(%arg0: i32) -> (i32, i32) {
    %c0_i32 = arith.constant 0 : i32
    %c0_i32_0 = arith.constant 0 : i32
    return %arg0, %c0_i32 : i32, i32
  }
  func.func @transform_1(%arg0: i32) -> (i32, i32) {
    %c0_i32 = arith.constant 0 : i32
    %c0_i32_0 = arith.constant 0 : i32
    %c0_i32_1 = arith.constant 0 : i32
    return %c0_i32, %c0_i32_0 : i32, i32
  }
  func.func @transform_2(%arg0: i32) -> (i32, i32) {
    %c0_i32 = arith.constant 0 : i32
    %c0_i32_0 = arith.constant 0 : i32
    %c0_i32_1 = arith.constant 0 : i32
    return %c0_i32, %c0_i32_0 : i32, i32
  }
  func.func @transform_3(%arg0: i32) -> (i32, i32) {
    %c0_i32 = arith.constant 0 : i32
    %c0_i32_0 = arith.constant 0 : i32
    %c0_i32_1 = arith.constant 0 : i32
    return %c0_i32, %c0_i32_0 : i32, i32
  }
  func.func @transform_4(%arg0: i32) -> (i32, i32) {
    %c0_i32 = arith.constant 0 : i32
    %c0_i32_0 = arith.constant 0 : i32
    %c0_i32_1 = arith.constant 0 : i32
    return %c0_i32, %c0_i32_0 : i32, i32
  }
  func.func @transform_5(%arg0: i32) -> (i32, i32) {
    %c0_i32 = arith.constant 0 : i32
    %c0_i32_0 = arith.constant 0 : i32
    %c0_i32_1 = arith.constant 0 : i32
    return %c0_i32, %c0_i32_0 : i32, i32
  }
  func.func @transform_6(%arg0: i32) -> (i32, i32) {
    %c0_i32 = arith.constant 0 : i32
    %c0_i32_0 = arith.constant 0 : i32
    %c0_i32_1 = arith.constant 0 : i32
    return %c0_i32, %c0_i32_0 : i32, i32
  }
  func.func @transform_7(%arg0: i32) -> (i32, i32) {
    %c0_i32 = arith.constant 0 : i32
    %c0_i32_0 = arith.constant 0 : i32
    %c0_i32_1 = arith.constant 0 : i32
    return %c0_i32, %c0_i32_0 : i32, i32
  }
  func.func @transform_8(%arg0: i32) -> (i32, i32) {
    %c0_i32 = arith.constant 0 : i32
    %c0_i32_0 = arith.constant 0 : i32
    %c0_i32_1 = arith.constant 0 : i32
    return %c0_i32, %c0_i32_0 : i32, i32
  }
  func.func @transform_9(%arg0: i32) -> (i32, i32) {
    %c0_i32 = arith.constant 0 : i32
    %c0_i32_0 = arith.constant 0 : i32
    return %arg0, %c0_i32 : i32, i32
  }
}

</mosaic_0001>

<llo_original>
// kernel: _armlp_apply.1
$region0: #{_armlp_apply.1}
  #allocation0 [shape = 'u32[]', space=smem, size = 0x4, offset = 0x4, fixed_abs, tag = 'smem constant byte address 0x4 - core index']
  #allocation1 [shape = 'u32[72,128]{1,0:T(1,128)}', space=vmem, size = 0x9000, scoped, tag = 'internal scratch']
  %s0 = inlined_call_operand.vmem [shape: f32[256,4], index: 0, kind: input, shape index: {}]
  %s1 = inlined_call_operand.vmem [shape: bf16[4,128], index: 1, kind: input, shape index: {}]
  %s2 = inlined_call_operand.vmem [shape: f32[1,128], index: 2, kind: input, shape index: {}]
  %s3 = inlined_call_operand.vmem [shape: bf16[128,128], index: 3, kind: input, shape index: {}]
  %s4 = inlined_call_operand.vmem [shape: f32[1,128], index: 4, kind: input, shape index: {}]
  %s5 = inlined_call_operand.vmem [shape: bf16[128,128], index: 5, kind: input, shape index: {}]
  %s6 = inlined_call_operand.vmem [shape: f32[1,128], index: 6, kind: input, shape index: {}]
  %s7 = inlined_call_operand.vmem [shape: bf16[128,128], index: 7, kind: input, shape index: {}]
  %s8 = inlined_call_operand.vmem [shape: f32[1,128], index: 8, kind: input, shape index: {}]
  %s9 = inlined_call_operand.vmem [shape: f32[256,8], index: 9, kind: output, shape index: {}]
  %s10 = sld [smem:[#allocation0]]
  $region46: #{_armlp_apply.1} parent=0
    _
  %s12 = ssub.s32 1, %s10
  %s13 = scalar_select 0, %s12, %s10
  // Predicated region
  $region2: #{_armlp_apply.1} parent=0 // pred_check
    _
  $region3: #{_armlp_apply.1} parent=0 // pred_check_branch
    %15 = sbr.rel (0) target = $region5
  $region4: #{_armlp_apply.1} parent=0 // pred_region
    _
  $region5: #{_armlp_apply.1} parent=0 // pred_fallthru
    _
  // Predicated region
  $region6: #{_armlp_apply.1} parent=0 // pred_check
    _
  $region7: #{_armlp_apply.1} parent=0 // pred_check_branch
    %17 = sbr.rel (0) target = $region9
  $region8: #{_armlp_apply.1} parent=0 // pred_region
    _
  $region9: #{_armlp_apply.1} parent=0 // pred_fallthru
    _
  // Predicated region
  $region10: #{_armlp_apply.1} parent=0 // pred_check
    _
  $region11: #{_armlp_apply.1} parent=0 // pred_check_branch
    %19 = sbr.rel (0) target = $region13
  $region12: #{_armlp_apply.1} parent=0 // pred_region
    _
  $region13: #{_armlp_apply.1} parent=0 // pred_fallthru
    _
  // Predicated region
  $region14: #{_armlp_apply.1} parent=0 // pred_check
    _
  $region15: #{_armlp_apply.1} parent=0 // pred_check_branch
    %21 = sbr.rel (0) target = $region17
  $region16: #{_armlp_apply.1} parent=0 // pred_region
    _
  $region17: #{_armlp_apply.1} parent=0 // pred_fallthru
    _
  // Predicated region
  $region18: #{_armlp_apply.1} parent=0 // pred_check
    _
  $region19: #{_armlp_apply.1} parent=0 // pred_check_branch
    %23 = sbr.rel (0) target = $region21
  $region20: #{_armlp_apply.1} parent=0 // pred_region
    _
  $region21: #{_armlp_apply.1} parent=0 // pred_fallthru
    _
  // Predicated region
  $region22: #{_armlp_apply.1} parent=0 // pred_check
    _
  $region23: #{_armlp_apply.1} parent=0 // pred_check_branch
    %25 = sbr.rel (0) target = $region25
  $region24: #{_armlp_apply.1} parent=0 // pred_region
    _
  $region25: #{_armlp_apply.1} parent=0 // pred_fallthru
    _
  // Predicated region
  $region26: #{_armlp_apply.1} parent=0 // pred_check
    _
  $region27: #{_armlp_apply.1} parent=0 // pred_check_branch
    %27 = sbr.rel (0) target = $region29
  $region28: #{_armlp_apply.1} parent=0 // pred_region
    _
  $region29: #{_armlp_apply.1} parent=0 // pred_fallthru
    _
  // Predicated region
  $region30: #{_armlp_apply.1} parent=0 // pred_check
    _
  $region31: #{_armlp_apply.1} parent=0 // pred_check_branch
    %29 = sbr.rel (0) target = $region33
  $region32: #{_armlp_apply.1} parent=0 // pred_region
    _
  $region33: #{_armlp_apply.1} parent=0 // pred_fallthru
    _
  // Predicated region
  $region34: #{_armlp_apply.1} parent=0 // pred_check
    _
  $region35: #{_armlp_apply.1} parent=0 // pred_check_branch
    %31 = sbr.rel (0) target = $region37
  $region36: #{_armlp_apply.1} parent=0 // pred_region
    _
  $region37: #{_armlp_apply.1} parent=0 // pred_fallthru
    _
  %v33 = vld [vmem:[%s0] sm:$0xff]
  %v34 = vld [vmem:[%s0 + $0x8] sm:$0xff]
  %v35 = vld [vmem:[%s0 + $0x10] sm:$0xff]
  %v36 = vld [vmem:[%s0 + $0x18] sm:$0xff]
  %v37 = vld [vmem:[%s0 + $0x20] sm:$0xff]
  %v38 = vld [vmem:[%s0 + $0x28] sm:$0xff]
  %v39 = vld [vmem:[%s0 + $0x30] sm:$0xff]
  %v40 = vld [vmem:[%s0 + $0x38] sm:$0xff]
  %v41 = vld [vmem:[%s0 + $0x40] sm:$0xff]
  %v42 = vld [vmem:[%s0 + $0x48] sm:$0xff]
  %v43 = vld [vmem:[%s0 + $0x50] sm:$0xff]
  %v44 = vld [vmem:[%s0 + $0x58] sm:$0xff]
  %v45 = vld [vmem:[%s0 + $0x60] sm:$0xff]
  %v46 = vld [vmem:[%s0 + $0x68] sm:$0xff]
  %v47 = vld [vmem:[%s0 + $0x70] sm:$0xff]
  %v48 = vld [vmem:[%s0 + $0x78] sm:$0xff]
  %v49 = vld [vmem:[%s0 + $0x80] sm:$0xff]
  %v50 = vld [vmem:[%s0 + $0x88] sm:$0xff]
  %v51 = vld [vmem:[%s0 + $0x90] sm:$0xff]
  %v52 = vld [vmem:[%s0 + $0x98] sm:$0xff]
  %v53 = vld [vmem:[%s0 + $0xa0] sm:$0xff]
  %v54 = vld [vmem:[%s0 + $0xa8] sm:$0xff]
  %v55 = vld [vmem:[%s0 + $0xb0] sm:$0xff]
  %v56 = vld [vmem:[%s0 + $0xb8] sm:$0xff]
  %v57 = vld [vmem:[%s0 + $0xc0] sm:$0xff]
  %v58 = vld [vmem:[%s0 + $0xc8] sm:$0xff]
  %v59 = vld [vmem:[%s0 + $0xd0] sm:$0xff]
  %v60 = vld [vmem:[%s0 + $0xd8] sm:$0xff]
  %v61 = vld [vmem:[%s0 + $0xe0] sm:$0xff]
  %v62 = vld [vmem:[%s0 + $0xe8] sm:$0xff]
  %v63 = vld [vmem:[%s0 + $0xf0] sm:$0xff]
  %v64 = vld [vmem:[%s0 + $0xf8] sm:$0xff]
  %v65 = vpack.c.bf16 %v34, %v33
  %v66 = vpack.c.bf16 %v36, %v35
  %v67 = vpack.c.bf16 %v38, %v37
  %v68 = vpack.c.bf16 %v40, %v39
  %v69 = vpack.c.bf16 %v42, %v41
  %v70 = vpack.c.bf16 %v44, %v43
  %v71 = vpack.c.bf16 %v46, %v45
  %v72 = vpack.c.bf16 %v48, %v47
  %v73 = vpack.c.bf16 %v50, %v49
  %v74 = vpack.c.bf16 %v52, %v51
  %v75 = vpack.c.bf16 %v54, %v53
  %v76 = vpack.c.bf16 %v56, %v55
  %v77 = vpack.c.bf16 %v58, %v57
  %v78 = vpack.c.bf16 %v60, %v59
  %v79 = vpack.c.bf16 %v62, %v61
  %v80 = vpack.c.bf16 %v64, %v63
  %v81 = vld [vmem:[%s1] sm:$0x3]
  %v82 = vld [vmem:[%s2] sm:$0x1]
  %v84 = vperm.slane %v82, 0
  %vm86 = vcmask 31744
  %v88 = vsel %vm86, %v65, 0
  %v91 = vsel %vm86, %v66, 0
  %v94 = vsel %vm86, %v67, 0
  %v97 = vsel %vm86, %v68, 0
  %v100 = vsel %vm86, %v69, 0
  %v103 = vsel %vm86, %v70, 0
  %v106 = vsel %vm86, %v71, 0
  %v109 = vsel %vm86, %v72, 0
  %v112 = vsel %vm86, %v73, 0
  %v115 = vsel %vm86, %v74, 0
  %v118 = vsel %vm86, %v75, 0
  %v121 = vsel %vm86, %v76, 0
  %v124 = vsel %vm86, %v77, 0
  %v127 = vsel %vm86, %v78, 0
  %v130 = vsel %vm86, %v79, 0
  %v133 = vsel %vm86, %v80, 0
  %vm135 = vcmask 1041408
  %v137 = vsel %vm135, %v81, 0
  %139 = vmatpush.bf16.msra.mxu0 0
  %140 = vmatpush.bf16.msra.mxu0 0
  %141 = vmatpush.bf16.msra.mxu0 0
  %142 = vmatpush.bf16.msra.mxu0 0
  %143 = vmatpush.bf16.msra.mxu0 0
  %144 = vmatpush.bf16.msra.mxu0 0
  %145 = vmatpush.bf16.msra.mxu0 0
  %146 = vmatpush.bf16.msra.mxu0 %v137
  %147 = vmatmul.bf16.gmra.mxu0 %v88
  %v148 = vpop.f32.mrf.mxu0
  %v149 = vadd.f32 %v84, %v148
  %v150 = vpop.f32.mrf.mxu0
  %v151 = vadd.f32 %v84, %v150
  %152 = vmatmul.bf16.gmra.mxu0 %v91
  %v153 = vpop.f32.mrf.mxu0
  %v154 = vadd.f32 %v84, %v153
  %v155 = vpop.f32.mrf.mxu0
  %v156 = vadd.f32 %v84, %v155
  %157 = vmatmul.bf16.gmra.mxu0 %v94
  %v158 = vpop.f32.mrf.mxu0
  %v159 = vadd.f32 %v84, %v158
  %v160 = vpop.f32.mrf.mxu0
  %v161 = vadd.f32 %v84, %v160
  %162 = vmatmul.bf16.gmra.mxu0 %v97
  %v163 = vpop.f32.mrf.mxu0
  %v164 = vadd.f32 %v84, %v163
  %v165 = vpop.f32.mrf.mxu0
  %v166 = vadd.f32 %v84, %v165
  %167 = vmatmul.bf16.gmra.mxu0 %v100
  %v168 = vpop.f32.mrf.mxu0
  %v169 = vadd.f32 %v84, %v168
  %v170 = vpop.f32.mrf.mxu0
  %v171 = vadd.f32 %v84, %v170
  %172 = vmatmul.bf16.gmra.mxu0 %v103
  %v173 = vpop.f32.mrf.mxu0
  %v174 = vadd.f32 %v84, %v173
  %v175 = vpop.f32.mrf.mxu0
  %v176 = vadd.f32 %v84, %v175
  %177 = vmatmul.bf16.gmra.mxu0 %v106
  %v178 = vpop.f32.mrf.mxu0
  %v179 = vadd.f32 %v84, %v178
  %v180 = vpop.f32.mrf.mxu0
  %v181 = vadd.f32 %v84, %v180
  %182 = vmatmul.bf16.gmra.mxu0 %v109
  %v183 = vpop.f32.mrf.mxu0
  %v184 = vadd.f32 %v84, %v183
  %v185 = vpop.f32.mrf.mxu0
  %v186 = vadd.f32 %v84, %v185
  %187 = vmatmul.bf16.gmra.mxu0 %v112
  %v188 = vpop.f32.mrf.mxu0
  %v189 = vadd.f32 %v84, %v188
  %v190 = vpop.f32.mrf.mxu0
  %v191 = vadd.f32 %v84, %v190
  %192 = vmatmul.bf16.gmra.mxu0 %v115
  %v193 = vpop.f32.mrf.mxu0
  %v194 = vadd.f32 %v84, %v193
  %v195 = vpop.f32.mrf.mxu0
  %v196 = vadd.f32 %v84, %v195
  %197 = vmatmul.bf16.gmra.mxu0 %v118
  %v198 = vpop.f32.mrf.mxu0
  %v199 = vadd.f32 %v84, %v198
  %v200 = vpop.f32.mrf.mxu0
  %v201 = vadd.f32 %v84, %v200
  %202 = vmatmul.bf16.gmra.mxu0 %v121
  %v203 = vpop.f32.mrf.mxu0
  %v204 = vadd.f32 %v84, %v203
  %v205 = vpop.f32.mrf.mxu0
  %v206 = vadd.f32 %v84, %v205
  %207 = vmatmul.bf16.gmra.mxu0 %v124
  %v208 = vpop.f32.mrf.mxu0
  %v209 = vadd.f32 %v84, %v208
  %v210 = vpop.f32.mrf.mxu0
  %v211 = vadd.f32 %v84, %v210
  %212 = vmatmul.bf16.gmra.mxu0 %v127
  %v213 = vpop.f32.mrf.mxu0
  %v214 = vadd.f32 %v84, %v213
  %v215 = vpop.f32.mrf.mxu0
  %v216 = vadd.f32 %v84, %v215
  %217 = vmatmul.bf16.gmra.mxu0 %v130
  %v218 = vpop.f32.mrf.mxu0
  %v219 = vadd.f32 %v84, %v218
  %v220 = vpop.f32.mrf.mxu0
  %v221 = vadd.f32 %v84, %v220
  %222 = vmatmul.bf16.gmra.mxu0 %v133
  %v223 = vpop.f32.mrf.mxu0
  %v224 = vadd.f32 %v84, %v223
  %v225 = vpop.f32.mrf.mxu0
  %v226 = vadd.f32 %v84, %v225
  %227 = vdwg.mxu0
  %v228 = vmax.f32 %v149, 0.0
  %v229 = vmax.f32 %v151, 0.0
  %v230 = vmax.f32 %v154, 0.0
  %v231 = vmax.f32 %v156, 0.0
  %v232 = vmax.f32 %v159, 0.0
  %v233 = vmax.f32 %v161, 0.0
  %v234 = vmax.f32 %v164, 0.0
  %v235 = vmax.f32 %v166, 0.0
  %v236 = vmax.f32 %v169, 0.0
  %v237 = vmax.f32 %v171, 0.0
  %v238 = vmax.f32 %v174, 0.0
  %v239 = vmax.f32 %v176, 0.0
  %v240 = vmax.f32 %v179, 0.0
  %v241 = vmax.f32 %v181, 0.0
  %v242 = vmax.f32 %v184, 0.0
  %v243 = vmax.f32 %v186, 0.0
  %v244 = vmax.f32 %v189, 0.0
  %v245 = vmax.f32 %v191, 0.0
  %v246 = vmax.f32 %v194, 0.0
  %v247 = vmax.f32 %v196, 0.0
  %v248 = vmax.f32 %v199, 0.0
  %v249 = vmax.f32 %v201, 0.0
  %v250 = vmax.f32 %v204, 0.0
  %v251 = vmax.f32 %v206, 0.0
  %v252 = vmax.f32 %v209, 0.0
  %v253 = vmax.f32 %v211, 0.0
  %v254 = vmax.f32 %v214, 0.0
  %v255 = vmax.f32 %v216, 0.0
  %v256 = vmax.f32 %v219, 0.0
  %v257 = vmax.f32 %v221, 0.0
  %v258 = vmax.f32 %v224, 0.0
  %v259 = vmax.f32 %v226, 0.0
  %v260 = vpack.c.bf16 %v229, %v228
  %v261 = vpack.c.bf16 %v231, %v230
  %v262 = vpack.c.bf16 %v233, %v232
  %v263 = vpack.c.bf16 %v235, %v234
  %v264 = vpack.c.bf16 %v237, %v236
  %v265 = vpack.c.bf16 %v239, %v238
  %v266 = vpack.c.bf16 %v241, %v240
  %v267 = vpack.c.bf16 %v243, %v242
  %v268 = vpack.c.bf16 %v245, %v244
  %v269 = vpack.c.bf16 %v247, %v246
  %v270 = vpack.c.bf16 %v249, %v248
  %v271 = vpack.c.bf16 %v251, %v250
  %v272 = vpack.c.bf16 %v253, %v252
  %v273 = vpack.c.bf16 %v255, %v254
  %v274 = vpack.c.bf16 %v257, %v256
  %v275 = vpack.c.bf16 %v259, %v258
  %v276 = vld [vmem:[%s3] sm:$0xf]
  %v277 = vld [vmem:[%s3 + $0x4] sm:$0xf]
  %v278 = vld [vmem:[%s3 + $0x8] sm:$0xf]
  %v279 = vld [vmem:[%s3 + $0xc] sm:$0xf]
  %v280 = vld [vmem:[%s3 + $0x10] sm:$0xf]
  %v281 = vld [vmem:[%s3 + $0x14] sm:$0xf]
  %v282 = vld [vmem:[%s3 + $0x18] sm:$0xf]
  %v283 = vld [vmem:[%s3 + $0x1c] sm:$0xf]
  %v284 = vld [vmem:[%s3 + $0x20] sm:$0xf]
  %v285 = vld [vmem:[%s3 + $0x24] sm:$0xf]
  %v286 = vld [vmem:[%s3 + $0x28] sm:$0xf]
  %v287 = vld [vmem:[%s3 + $0x2c] sm:$0xf]
  %v288 = vld [vmem:[%s3 + $0x30] sm:$0xf]
  %v289 = vld [vmem:[%s3 + $0x34] sm:$0xf]
  %v290 = vld [vmem:[%s3 + $0x38] sm:$0xf]
  %v291 = vld [vmem:[%s3 + $0x3c] sm:$0xf]
  %v292 = vld [vmem:[%s4] sm:$0x1]
  %v294 = vperm.slane %v292, 0
  %v312 = vunpack.c.l.b16 %v276
  %v313 = vunpack.c.l.b16 %v277
  %v314 = vunpack.c.l.b16 %v278
  %v315 = vunpack.c.l.b16 %v279
  %v316 = vunpack.c.l.b16 %v280
  %v317 = vunpack.c.l.b16 %v281
  %v318 = vunpack.c.l.b16 %v282
  %v319 = vunpack.c.l.b16 %v283
  %v320 = vunpack.c.l.b16 %v284
  %v321 = vunpack.c.l.b16 %v285
  %v322 = vunpack.c.l.b16 %v286
  %v323 = vunpack.c.l.b16 %v287
  %v324 = vunpack.c.l.b16 %v288
  %v325 = vunpack.c.l.b16 %v289
  %v326 = vunpack.c.l.b16 %v290
  %v327 = vunpack.c.l.b16 %v291
  %v328 = vpack.c.b16 %v313, %v312
  %v329 = vpack.c.b16 %v315, %v314
  %v330 = vpack.c.b16 %v317, %v316
  %v331 = vpack.c.b16 %v319, %v318
  %v332 = vpack.c.b16 %v321, %v320
  %v333 = vpack.c.b16 %v323, %v322
  %v334 = vpack.c.b16 %v325, %v324
  %v335 = vpack.c.b16 %v327, %v326
  %344 = vmatpush.bf16.msra.mxu0 %v335
  %345 = vmatpush.bf16.msra.mxu0 %v334
  %346 = vmatpush.bf16.msra.mxu0 %v333
  %347 = vmatpush.bf16.msra.mxu0 %v332
  %348 = vmatpush.bf16.msra.mxu0 %v331
  %349 = vmatpush.bf16.msra.mxu0 %v330
  %350 = vmatpush.bf16.msra.mxu0 %v329
  %351 = vmatpush.bf16.msra.mxu0 %v328
  %352 = vmatmul.bf16.gmra.mxu0 %v260
  %v353 = vpop.f32.mrf.mxu0
  %v354 = vadd.f32 %v294, %v353
  %v355 = vpop.f32.mrf.mxu0
  %v356 = vadd.f32 %v294, %v355
  %357 = vmatmul.bf16.gmra.mxu0 %v261
  %v358 = vpop.f32.mrf.mxu0
  %v359 = vadd.f32 %v294, %v358
  %v360 = vpop.f32.mrf.mxu0
  %v361 = vadd.f32 %v294, %v360
  %362 = vmatmul.bf16.gmra.mxu0 %v262
  %v363 = vpop.f32.mrf.mxu0
  %v364 = vadd.f32 %v294, %v363
  %v365 = vpop.f32.mrf.mxu0
  %v366 = vadd.f32 %v294, %v365
  %367 = vmatmul.bf16.gmra.mxu0 %v263
  %v368 = vpop.f32.mrf.mxu0
  %v369 = vadd.f32 %v294, %v368
  %v370 = vpop.f32.mrf.mxu0
  %v371 = vadd.f32 %v294, %v370
  %372 = vmatmul.bf16.gmra.mxu0 %v264
  %v373 = vpop.f32.mrf.mxu0
  %v374 = vadd.f32 %v294, %v373
  %v375 = vpop.f32.mrf.mxu0
  %v376 = vadd.f32 %v294, %v375
  %377 = vmatmul.bf16.gmra.mxu0 %v265
  %v378 = vpop.f32.mrf.mxu0
  %v379 = vadd.f32 %v294, %v378
  %v380 = vpop.f32.mrf.mxu0
  %v381 = vadd.f32 %v294, %v380
  %382 = vmatmul.bf16.gmra.mxu0 %v266
  %v383 = vpop.f32.mrf.mxu0
  %v384 = vadd.f32 %v294, %v383
  %v385 = vpop.f32.mrf.mxu0
  %v386 = vadd.f32 %v294, %v385
  %387 = vmatmul.bf16.gmra.mxu0 %v267
  %v388 = vpop.f32.mrf.mxu0
  %v389 = vadd.f32 %v294, %v388
  %v390 = vpop.f32.mrf.mxu0
  %v391 = vadd.f32 %v294, %v390
  %392 = vmatmul.bf16.gmra.mxu0 %v268
  %v393 = vpop.f32.mrf.mxu0
  %v394 = vadd.f32 %v294, %v393
  %v395 = vpop.f32.mrf.mxu0
  %v396 = vadd.f32 %v294, %v395
  %397 = vmatmul.bf16.gmra.mxu0 %v269
  %v398 = vpop.f32.mrf.mxu0
  %v399 = vadd.f32 %v294, %v398
  %v400 = vpop.f32.mrf.mxu0
  %v401 = vadd.f32 %v294, %v400
  %402 = vmatmul.bf16.gmra.mxu0 %v270
  %v403 = vpop.f32.mrf.mxu0
  %v404 = vadd.f32 %v294, %v403
  %v405 = vpop.f32.mrf.mxu0
  %v406 = vadd.f32 %v294, %v405
  %407 = vmatmul.bf16.gmra.mxu0 %v271
  %v408 = vpop.f32.mrf.mxu0
  %v409 = vadd.f32 %v294, %v408
  %v410 = vpop.f32.mrf.mxu0
  %v411 = vadd.f32 %v294, %v410
  %412 = vmatmul.bf16.gmra.mxu0 %v272
  %v413 = vpop.f32.mrf.mxu0
  %v414 = vadd.f32 %v294, %v413
  %v415 = vpop.f32.mrf.mxu0
  %v416 = vadd.f32 %v294, %v415
  %417 = vmatmul.bf16.gmra.mxu0 %v273
  %v418 = vpop.f32.mrf.mxu0
  %v419 = vadd.f32 %v294, %v418
  %v420 = vpop.f32.mrf.mxu0
  %v421 = vadd.f32 %v294, %v420
  %422 = vmatmul.bf16.gmra.mxu0 %v274
  %v423 = vpop.f32.mrf.mxu0
  %v424 = vadd.f32 %v294, %v423
  %v425 = vpop.f32.mrf.mxu0
  %v426 = vadd.f32 %v294, %v425
  %427 = vmatmul.bf16.gmra.mxu0 %v275
  %v428 = vpop.f32.mrf.mxu0
  %v429 = vadd.f32 %v294, %v428
  %v430 = vpop.f32.mrf.mxu0
  %v431 = vadd.f32 %v294, %v430
  %432 = vdwg.mxu0
  %v433 = vmax.f32 %v354, 0.0
  %v434 = vmax.f32 %v356, 0.0
  %v435 = vmax.f32 %v359, 0.0
  %v436 = vmax.f32 %v361, 0.0
  %v437 = vmax.f32 %v364, 0.0
  %v438 = vmax.f32 %v366, 0.0
  %v439 = vmax.f32 %v369, 0.0
  %v440 = vmax.f32 %v371, 0.0
  %v441 = vmax.f32 %v374, 0.0
  %v442 = vmax.f32 %v376, 0.0
  %v443 = vmax.f32 %v379, 0.0
  %v444 = vmax.f32 %v381, 0.0
  %v445 = vmax.f32 %v384, 0.0
  %v446 = vmax.f32 %v386, 0.0
  %v447 = vmax.f32 %v389, 0.0
  %v448 = vmax.f32 %v391, 0.0
  %v449 = vmax.f32 %v394, 0.0
  %v450 = vmax.f32 %v396, 0.0
  %v451 = vmax.f32 %v399, 0.0
  %v452 = vmax.f32 %v401, 0.0
  %v453 = vmax.f32 %v404, 0.0
  %v454 = vmax.f32 %v406, 0.0
  %v455 = vmax.f32 %v409, 0.0
  %v456 = vmax.f32 %v411, 0.0
  %v457 = vmax.f32 %v414, 0.0
  %v458 = vmax.f32 %v416, 0.0
  %v459 = vmax.f32 %v419, 0.0
  %v460 = vmax.f32 %v421, 0.0
  %v461 = vmax.f32 %v424, 0.0
  %v462 = vmax.f32 %v426, 0.0
  %v463 = vmax.f32 %v429, 0.0
  %v464 = vmax.f32 %v431, 0.0
  %v465 = vpack.c.bf16 %v434, %v433
  %v466 = vpack.c.bf16 %v436, %v435
  %v467 = vpack.c.bf16 %v438, %v437
  %v468 = vpack.c.bf16 %v440, %v439
  %v469 = vpack.c.bf16 %v442, %v441
  %v470 = vpack.c.bf16 %v444, %v443
  %v471 = vpack.c.bf16 %v446, %v445
  %v472 = vpack.c.bf16 %v448, %v447
  %v473 = vpack.c.bf16 %v450, %v449
  %v474 = vpack.c.bf16 %v452, %v451
  %v475 = vpack.c.bf16 %v454, %v453
  %v476 = vpack.c.bf16 %v456, %v455
  %v477 = vpack.c.bf16 %v458, %v457
  %v478 = vpack.c.bf16 %v460, %v459
  %v479 = vpack.c.bf16 %v462, %v461
  %v480 = vpack.c.bf16 %v464, %v463
  %v481 = vld [vmem:[%s5] sm:$0xf]
  %v482 = vld [vmem:[%s5 + $0x4] sm:$0xf]
  %v483 = vld [vmem:[%s5 + $0x8] sm:$0xf]
  %v484 = vld [vmem:[%s5 + $0xc] sm:$0xf]
  %v485 = vld [vmem:[%s5 + $0x10] sm:$0xf]
  %v486 = vld [vmem:[%s5 + $0x14] sm:$0xf]
  %v487 = vld [vmem:[%s5 + $0x18] sm:$0xf]
  %v488 = vld [vmem:[%s5 + $0x1c] sm:$0xf]
  %v489 = vld [vmem:[%s5 + $0x20] sm:$0xf]
  %v490 = vld [vmem:[%s5 + $0x24] sm:$0xf]
  %v491 = vld [vmem:[%s5 + $0x28] sm:$0xf]
  %v492 = vld [vmem:[%s5 + $0x2c] sm:$0xf]
  %v493 = vld [vmem:[%s5 + $0x30] sm:$0xf]
  %v494 = vld [vmem:[%s5 + $0x34] sm:$0xf]
  %v495 = vld [vmem:[%s5 + $0x38] sm:$0xf]
  %v496 = vld [vmem:[%s5 + $0x3c] sm:$0xf]
  %v497 = vld [vmem:[%s6] sm:$0x1]
  %v499 = vperm.slane %v497, 0
  %v517 = vunpack.c.l.b16 %v481
  %v518 = vunpack.c.l.b16 %v482
  %v519 = vunpack.c.l.b16 %v483
  %v520 = vunpack.c.l.b16 %v484
  %v521 = vunpack.c.l.b16 %v485
  %v522 = vunpack.c.l.b16 %v486
  %v523 = vunpack.c.l.b16 %v487
  %v524 = vunpack.c.l.b16 %v488
  %v525 = vunpack.c.l.b16 %v489
  %v526 = vunpack.c.l.b16 %v490
  %v527 = vunpack.c.l.b16 %v491
  %v528 = vunpack.c.l.b16 %v492
  %v529 = vunpack.c.l.b16 %v493
  %v530 = vunpack.c.l.b16 %v494
  %v531 = vunpack.c.l.b16 %v495
  %v532 = vunpack.c.l.b16 %v496
  %v533 = vpack.c.b16 %v518, %v517
  %v534 = vpack.c.b16 %v520, %v519
  %v535 = vpack.c.b16 %v522, %v521
  %v536 = vpack.c.b16 %v524, %v523
  %v537 = vpack.c.b16 %v526, %v525
  %v538 = vpack.c.b16 %v528, %v527
  %v539 = vpack.c.b16 %v530, %v529
  %v540 = vpack.c.b16 %v532, %v531
  %549 = vmatpush.bf16.msra.mxu0 %v540
  %550 = vmatpush.bf16.msra.mxu0 %v539
  %551 = vmatpush.bf16.msra.mxu0 %v538
  %552 = vmatpush.bf16.msra.mxu0 %v537
  %553 = vmatpush.bf16.msra.mxu0 %v536
  %554 = vmatpush.bf16.msra.mxu0 %v535
  %555 = vmatpush.bf16.msra.mxu0 %v534
  %556 = vmatpush.bf16.msra.mxu0 %v533
  %557 = vmatmul.bf16.gmra.mxu0 %v465
  %v558 = vpop.f32.mrf.mxu0
  %v559 = vadd.f32 %v499, %v558
  %v560 = vpop.f32.mrf.mxu0
  %v561 = vadd.f32 %v499, %v560
  %562 = vmatmul.bf16.gmra.mxu0 %v466
  %v563 = vpop.f32.mrf.mxu0
  %v564 = vadd.f32 %v499, %v563
  %v565 = vpop.f32.mrf.mxu0
  %v566 = vadd.f32 %v499, %v565
  %567 = vmatmul.bf16.gmra.mxu0 %v467
  %v568 = vpop.f32.mrf.mxu0
  %v569 = vadd.f32 %v499, %v568
  %v570 = vpop.f32.mrf.mxu0
  %v571 = vadd.f32 %v499, %v570
  %572 = vmatmul.bf16.gmra.mxu0 %v468
  %v573 = vpop.f32.mrf.mxu0
  %v574 = vadd.f32 %v499, %v573
  %v575 = vpop.f32.mrf.mxu0
  %v576 = vadd.f32 %v499, %v575
  %577 = vmatmul.bf16.gmra.mxu0 %v469
  %v578 = vpop.f32.mrf.mxu0
  %v579 = vadd.f32 %v499, %v578
  %v580 = vpop.f32.mrf.mxu0
  %v581 = vadd.f32 %v499, %v580
  %582 = vmatmul.bf16.gmra.mxu0 %v470
  %v583 = vpop.f32.mrf.mxu0
  %v584 = vadd.f32 %v499, %v583
  %v585 = vpop.f32.mrf.mxu0
  %v586 = vadd.f32 %v499, %v585
  %587 = vmatmul.bf16.gmra.mxu0 %v471
  %v588 = vpop.f32.mrf.mxu0
  %v589 = vadd.f32 %v499, %v588
  %v590 = vpop.f32.mrf.mxu0
  %v591 = vadd.f32 %v499, %v590
  %592 = vmatmul.bf16.gmra.mxu0 %v472
  %v593 = vpop.f32.mrf.mxu0
  %v594 = vadd.f32 %v499, %v593
  %v595 = vpop.f32.mrf.mxu0
  %v596 = vadd.f32 %v499, %v595
  %597 = vmatmul.bf16.gmra.mxu0 %v473
  %v598 = vpop.f32.mrf.mxu0
  %v599 = vadd.f32 %v499, %v598
  %v600 = vpop.f32.mrf.mxu0
  %v601 = vadd.f32 %v499, %v600
  %602 = vmatmul.bf16.gmra.mxu0 %v474
  %v603 = vpop.f32.mrf.mxu0
  %v604 = vadd.f32 %v499, %v603
  %v605 = vpop.f32.mrf.mxu0
  %v606 = vadd.f32 %v499, %v605
  %607 = vmatmul.bf16.gmra.mxu0 %v475
  %v608 = vpop.f32.mrf.mxu0
  %v609 = vadd.f32 %v499, %v608
  %v610 = vpop.f32.mrf.mxu0
  %v611 = vadd.f32 %v499, %v610
  %612 = vmatmul.bf16.gmra.mxu0 %v476
  %v613 = vpop.f32.mrf.mxu0
  %v614 = vadd.f32 %v499, %v613
  %v615 = vpop.f32.mrf.mxu0
  %v616 = vadd.f32 %v499, %v615
  %617 = vmatmul.bf16.gmra.mxu0 %v477
  %v618 = vpop.f32.mrf.mxu0
  %v619 = vadd.f32 %v499, %v618
  %v620 = vpop.f32.mrf.mxu0
  %v621 = vadd.f32 %v499, %v620
  %622 = vmatmul.bf16.gmra.mxu0 %v478
  %v623 = vpop.f32.mrf.mxu0
  %v624 = vadd.f32 %v499, %v623
  %v625 = vpop.f32.mrf.mxu0
  %v626 = vadd.f32 %v499, %v625
  %627 = vmatmul.bf16.gmra.mxu0 %v479
  %v628 = vpop.f32.mrf.mxu0
  %v629 = vadd.f32 %v499, %v628
  %v630 = vpop.f32.mrf.mxu0
  %v631 = vadd.f32 %v499, %v630
  %632 = vmatmul.bf16.gmra.mxu0 %v480
  %v633 = vpop.f32.mrf.mxu0
  %v634 = vadd.f32 %v499, %v633
  %v635 = vpop.f32.mrf.mxu0
  %v636 = vadd.f32 %v499, %v635
  %637 = vdwg.mxu0
  %v638 = vmax.f32 %v559, 0.0
  %v639 = vmax.f32 %v561, 0.0
  %v640 = vmax.f32 %v564, 0.0
  %v641 = vmax.f32 %v566, 0.0
  %v642 = vmax.f32 %v569, 0.0
  %v643 = vmax.f32 %v571, 0.0
  %v644 = vmax.f32 %v574, 0.0
  %v645 = vmax.f32 %v576, 0.0
  %v646 = vmax.f32 %v579, 0.0
  %v647 = vmax.f32 %v581, 0.0
  %v648 = vmax.f32 %v584, 0.0
  %v649 = vmax.f32 %v586, 0.0
  %v650 = vmax.f32 %v589, 0.0
  %v651 = vmax.f32 %v591, 0.0
  %v652 = vmax.f32 %v594, 0.0
  %v653 = vmax.f32 %v596, 0.0
  %v654 = vmax.f32 %v599, 0.0
  %v655 = vmax.f32 %v601, 0.0
  %v656 = vmax.f32 %v604, 0.0
  %v657 = vmax.f32 %v606, 0.0
  %v658 = vmax.f32 %v609, 0.0
  %v659 = vmax.f32 %v611, 0.0
  %v660 = vmax.f32 %v614, 0.0
  %v661 = vmax.f32 %v616, 0.0
  %v662 = vmax.f32 %v619, 0.0
  %v663 = vmax.f32 %v621, 0.0
  %v664 = vmax.f32 %v624, 0.0
  %v665 = vmax.f32 %v626, 0.0
  %v666 = vmax.f32 %v629, 0.0
  %v667 = vmax.f32 %v631, 0.0
  %v668 = vmax.f32 %v634, 0.0
  %v669 = vmax.f32 %v636, 0.0
  %v670 = vpack.c.bf16 %v639, %v638
  %v671 = vpack.c.bf16 %v641, %v640
  %v672 = vpack.c.bf16 %v643, %v642
  %v673 = vpack.c.bf16 %v645, %v644
  %v674 = vpack.c.bf16 %v647, %v646
  %v675 = vpack.c.bf16 %v649, %v648
  %v676 = vpack.c.bf16 %v651, %v650
  %v677 = vpack.c.bf16 %v653, %v652
  %v678 = vpack.c.bf16 %v655, %v654
  %v679 = vpack.c.bf16 %v657, %v656
  %v680 = vpack.c.bf16 %v659, %v658
  %v681 = vpack.c.bf16 %v661, %v660
  %v682 = vpack.c.bf16 %v663, %v662
  %v683 = vpack.c.bf16 %v665, %v664
  %v684 = vpack.c.bf16 %v667, %v666
  %v685 = vpack.c.bf16 %v669, %v668
  %v686 = vld [vmem:[%s7] sm:$0xf]
  %v687 = vld [vmem:[%s7 + $0x4] sm:$0xf]
  %v688 = vld [vmem:[%s7 + $0x8] sm:$0xf]
  %v689 = vld [vmem:[%s7 + $0xc] sm:$0xf]
  %v690 = vld [vmem:[%s7 + $0x10] sm:$0xf]
  %v691 = vld [vmem:[%s7 + $0x14] sm:$0xf]
  %v692 = vld [vmem:[%s7 + $0x18] sm:$0xf]
  %v693 = vld [vmem:[%s7 + $0x1c] sm:$0xf]
  %v694 = vld [vmem:[%s7 + $0x20] sm:$0xf]
  %v695 = vld [vmem:[%s7 + $0x24] sm:$0xf]
  %v696 = vld [vmem:[%s7 + $0x28] sm:$0xf]
  %v697 = vld [vmem:[%s7 + $0x2c] sm:$0xf]
  %v698 = vld [vmem:[%s7 + $0x30] sm:$0xf]
  %v699 = vld [vmem:[%s7 + $0x34] sm:$0xf]
  %v700 = vld [vmem:[%s7 + $0x38] sm:$0xf]
  %v701 = vld [vmem:[%s7 + $0x3c] sm:$0xf]
  %v702 = vld [vmem:[%s8] sm:$0x1]
  %v704 = vperm.slane %v702, 0
  %v722 = vunpack.c.l.b16 %v686
  %v723 = vunpack.c.l.b16 %v687
  %v724 = vunpack.c.l.b16 %v688
  %v725 = vunpack.c.l.b16 %v689
  %v726 = vunpack.c.l.b16 %v690
  %v727 = vunpack.c.l.b16 %v691
  %v728 = vunpack.c.l.b16 %v692
  %v729 = vunpack.c.l.b16 %v693
  %v730 = vunpack.c.l.b16 %v694
  %v731 = vunpack.c.l.b16 %v695
  %v732 = vunpack.c.l.b16 %v696
  %v733 = vunpack.c.l.b16 %v697
  %v734 = vunpack.c.l.b16 %v698
  %v735 = vunpack.c.l.b16 %v699
  %v736 = vunpack.c.l.b16 %v700
  %v737 = vunpack.c.l.b16 %v701
  %v738 = vpack.c.b16 %v723, %v722
  %v739 = vpack.c.b16 %v725, %v724
  %v740 = vpack.c.b16 %v727, %v726
  %v741 = vpack.c.b16 %v729, %v728
  %v742 = vpack.c.b16 %v731, %v730
  %v743 = vpack.c.b16 %v733, %v732
  %v744 = vpack.c.b16 %v735, %v734
  %v745 = vpack.c.b16 %v737, %v736
  %754 = vmatpush.bf16.msra.mxu0 %v745
  %755 = vmatpush.bf16.msra.mxu0 %v744
  %756 = vmatpush.bf16.msra.mxu0 %v743
  %757 = vmatpush.bf16.msra.mxu0 %v742
  %758 = vmatpush.bf16.msra.mxu0 %v741
  %759 = vmatpush.bf16.msra.mxu0 %v740
  %760 = vmatpush.bf16.msra.mxu0 %v739
  %761 = vmatpush.bf16.msra.mxu0 %v738
  %762 = vmatmul.bf16.gmra.mxu0 %v670
  %v763 = vpop.f32.mrf.mxu0
  %v764 = vadd.f32 %v704, %v763
  %v765 = vpop.f32.mrf.mxu0
  %v766 = vadd.f32 %v704, %v765
  %767 = vmatmul.bf16.gmra.mxu0 %v671
  %v768 = vpop.f32.mrf.mxu0
  %v769 = vadd.f32 %v704, %v768
  %v770 = vpop.f32.mrf.mxu0
  %v771 = vadd.f32 %v704, %v770
  %772 = vmatmul.bf16.gmra.mxu0 %v672
  %v773 = vpop.f32.mrf.mxu0
  %v774 = vadd.f32 %v704, %v773
  %v775 = vpop.f32.mrf.mxu0
  %v776 = vadd.f32 %v704, %v775
  %777 = vmatmul.bf16.gmra.mxu0 %v673
  %v778 = vpop.f32.mrf.mxu0
  %v779 = vadd.f32 %v704, %v778
  %v780 = vpop.f32.mrf.mxu0
  %v781 = vadd.f32 %v704, %v780
  %782 = vmatmul.bf16.gmra.mxu0 %v674
  %v783 = vpop.f32.mrf.mxu0
  %v784 = vadd.f32 %v704, %v783
  %v785 = vpop.f32.mrf.mxu0
  %v786 = vadd.f32 %v704, %v785
  %787 = vmatmul.bf16.gmra.mxu0 %v675
  %v788 = vpop.f32.mrf.mxu0
  %v789 = vadd.f32 %v704, %v788
  %v790 = vpop.f32.mrf.mxu0
  %v791 = vadd.f32 %v704, %v790
  %792 = vmatmul.bf16.gmra.mxu0 %v676
  %v793 = vpop.f32.mrf.mxu0
  %v794 = vadd.f32 %v704, %v793
  %v795 = vpop.f32.mrf.mxu0
  %v796 = vadd.f32 %v704, %v795
  %797 = vmatmul.bf16.gmra.mxu0 %v677
  %v798 = vpop.f32.mrf.mxu0
  %v799 = vadd.f32 %v704, %v798
  %v800 = vpop.f32.mrf.mxu0
  %v801 = vadd.f32 %v704, %v800
  %802 = vmatmul.bf16.gmra.mxu0 %v678
  %v803 = vpop.f32.mrf.mxu0
  %v804 = vadd.f32 %v704, %v803
  %v805 = vpop.f32.mrf.mxu0
  %v806 = vadd.f32 %v704, %v805
  %807 = vmatmul.bf16.gmra.mxu0 %v679
  %v808 = vpop.f32.mrf.mxu0
  %v809 = vadd.f32 %v704, %v808
  %v810 = vpop.f32.mrf.mxu0
  %v811 = vadd.f32 %v704, %v810
  %812 = vmatmul.bf16.gmra.mxu0 %v680
  %v813 = vpop.f32.mrf.mxu0
  %v814 = vadd.f32 %v704, %v813
  %v815 = vpop.f32.mrf.mxu0
  %v816 = vadd.f32 %v704, %v815
  %817 = vmatmul.bf16.gmra.mxu0 %v681
  %v818 = vpop.f32.mrf.mxu0
  %v819 = vadd.f32 %v704, %v818
  %v820 = vpop.f32.mrf.mxu0
  %v821 = vadd.f32 %v704, %v820
  %822 = vmatmul.bf16.gmra.mxu0 %v682
  %v823 = vpop.f32.mrf.mxu0
  %v824 = vadd.f32 %v704, %v823
  %v825 = vpop.f32.mrf.mxu0
  %v826 = vadd.f32 %v704, %v825
  %827 = vmatmul.bf16.gmra.mxu0 %v683
  %v828 = vpop.f32.mrf.mxu0
  %v829 = vadd.f32 %v704, %v828
  %v830 = vpop.f32.mrf.mxu0
  %v831 = vadd.f32 %v704, %v830
  %832 = vmatmul.bf16.gmra.mxu0 %v684
  %v833 = vpop.f32.mrf.mxu0
  %v834 = vadd.f32 %v704, %v833
  %v835 = vpop.f32.mrf.mxu0
  %v836 = vadd.f32 %v704, %v835
  %837 = vmatmul.bf16.gmra.mxu0 %v685
  %v838 = vpop.f32.mrf.mxu0
  %v839 = vadd.f32 %v704, %v838
  %v840 = vpop.f32.mrf.mxu0
  %v841 = vadd.f32 %v704, %v840
  %842 = vdwg.mxu0
  %vm843 = vcmask 64512
  %844 = vst.msk [vmem:[%s9] sm:$0xff] %vm843, %v764
  %845 = vst.msk [vmem:[%s9 + $0x8] sm:$0xff] %vm843, %v766
  %846 = vst.msk [vmem:[%s9 + $0x10] sm:$0xff] %vm843, %v769
  %847 = vst.msk [vmem:[%s9 + $0x18] sm:$0xff] %vm843, %v771
  %848 = vst.msk [vmem:[%s9 + $0x20] sm:$0xff] %vm843, %v774
  %849 = vst.msk [vmem:[%s9 + $0x28] sm:$0xff] %vm843, %v776
  %850 = vst.msk [vmem:[%s9 + $0x30] sm:$0xff] %vm843, %v779
  %851 = vst.msk [vmem:[%s9 + $0x38] sm:$0xff] %vm843, %v781
  %852 = vst.msk [vmem:[%s9 + $0x40] sm:$0xff] %vm843, %v784
  %853 = vst.msk [vmem:[%s9 + $0x48] sm:$0xff] %vm843, %v786
  %854 = vst.msk [vmem:[%s9 + $0x50] sm:$0xff] %vm843, %v789
  %855 = vst.msk [vmem:[%s9 + $0x58] sm:$0xff] %vm843, %v791
  %856 = vst.msk [vmem:[%s9 + $0x60] sm:$0xff] %vm843, %v794
  %857 = vst.msk [vmem:[%s9 + $0x68] sm:$0xff] %vm843, %v796
  %858 = vst.msk [vmem:[%s9 + $0x70] sm:$0xff] %vm843, %v799
  %859 = vst.msk [vmem:[%s9 + $0x78] sm:$0xff] %vm843, %v801
  %860 = vst.msk [vmem:[%s9 + $0x80] sm:$0xff] %vm843, %v804
  %861 = vst.msk [vmem:[%s9 + $0x88] sm:$0xff] %vm843, %v806
  %862 = vst.msk [vmem:[%s9 + $0x90] sm:$0xff] %vm843, %v809
  %863 = vst.msk [vmem:[%s9 + $0x98] sm:$0xff] %vm843, %v811
  %864 = vst.msk [vmem:[%s9 + $0xa0] sm:$0xff] %vm843, %v814
  %865 = vst.msk [vmem:[%s9 + $0xa8] sm:$0xff] %vm843, %v816
  %866 = vst.msk [vmem:[%s9 + $0xb0] sm:$0xff] %vm843, %v819
  %867 = vst.msk [vmem:[%s9 + $0xb8] sm:$0xff] %vm843, %v821
  %868 = vst.msk [vmem:[%s9 + $0xc0] sm:$0xff] %vm843, %v824
  %869 = vst.msk [vmem:[%s9 + $0xc8] sm:$0xff] %vm843, %v826
  %870 = vst.msk [vmem:[%s9 + $0xd0] sm:$0xff] %vm843, %v829
  %871 = vst.msk [vmem:[%s9 + $0xd8] sm:$0xff] %vm843, %v831
  %872 = vst.msk [vmem:[%s9 + $0xe0] sm:$0xff] %vm843, %v834
  %873 = vst.msk [vmem:[%s9 + $0xe8] sm:$0xff] %vm843, %v836
  %874 = vst.msk [vmem:[%s9 + $0xf0] sm:$0xff] %vm843, %v839
  %875 = vst.msk [vmem:[%s9 + $0xf8] sm:$0xff] %vm843, %v841
  // Predicated region
  $region38: #{_armlp_apply.1} parent=0 // pred_check
    _
  $region39: #{_armlp_apply.1} parent=0 // pred_check_branch
    %877 = sbr.rel (0) target = $region41
  $region40: #{_armlp_apply.1} parent=0 // pred_region
    _
  $region41: #{_armlp_apply.1} parent=0 // pred_fallthru
    _
  // Predicated region
  $region42: #{_armlp_apply.1} parent=0 // pred_check
    _
  $region43: #{_armlp_apply.1} parent=0 // pred_check_branch
    %879 = sbr.rel (0) target = $region45
  $region44: #{_armlp_apply.1} parent=0 // pred_region
    _
  $region45: #{_armlp_apply.1} parent=0 // pred_fallthru
    _

</llo_original>
